<compile_context>
chip_gen: v7x
topology: tpu7x:2x2x1
jax: 0.10.0
libtpu: 0.0.40
codegen_flags: <defaults>
</compile_context>

<pallas_src>
import functools

import jax
import jax.numpy as jnp
import numpy as np
from jax.experimental import pallas as pl
from jax.experimental.pallas import tpu as pltpu

# Max bytes for the double-buffered resident RHS stripe (fits v7x comfortably).
_RESIDENT_RHS_BYTES = 16 << 20


# --------------------------------------------------------------------------
# Padding / tile selection helpers
# --------------------------------------------------------------------------
def _round_up(x, m):
    return ((x + m - 1) // m) * m


def _pick_tile(padded_dim, pref):
    """Largest multiple of 128 that is <= pref and divides padded_dim."""
    t = min(pref, padded_dim)
    t = max(128, (t // 128) * 128)
    while padded_dim % t != 0:
        t -= 128
    return t


def _pad_and_tile(dim, pref):
    """Return (padded_dim, tile).

    tile is a multiple of 128, <= pref; padded_dim = round_up(dim, tile).
    Prefers large tiles but caps the padding added beyond plain 128-alignment
    (so the N^2 adjacency stream is not blown up just to get a bigger tile).
    """
    base = _round_up(dim, 128)
    max_extra = max(128, base // 4)
    t = min(pref, base)
    t = max(128, (t // 128) * 128)
    while t > 128 and _round_up(dim, t) - base > max_extra:
        t -= 128
    return _round_up(dim, t), t


def _split_for_megacore(padded, tile):
    """If there is only one row tile, shrink the tile so v7x's two TensorCores
    both get work (tile stays a 128-multiple divisor of the padded dim)."""
    if padded // tile >= 2 or padded <= 128:
        return tile
    t = max(128, (tile // 2 // 128) * 128)
    while padded % t != 0:
        t -= 128
    return t


def _prep(a, rows, cols):
    """Pad a 2-D operand to (rows, cols).

    If no padding is needed the array is returned untouched (the kernel casts
    per tile, so f32 inputs are read at 4 B/elt with no extra HBM pass).
    If padding is needed, the pad + bf16 downcast are one fused pass so the
    extra HBM write/read is 2 B/elt instead of 4.
    """
    r, c = a.shape
    if r == rows and c == cols:
        return a
    return jnp.pad(a.astype(jnp.bfloat16), ((0, rows - r), (0, cols - c)))


# --------------------------------------------------------------------------
# Kernels
# --------------------------------------------------------------------------
def _make_kernel(*, resident, tk, with_bias):
    """Tiled matmul kernel body: acc += bf16(A_tile) @ bf16(B_tile).

    resident=True  -> B ref is a full-contraction (K, tn) stripe; slice the
                      current tk rows with pl.ds.
    resident=False -> B ref is an already-tiled (tk, tn) block.
    Bias (1, tn) f32 is added exactly once, on the last contraction step.
    """

    def body(a_ref, b_ref, bias_ref, o_ref, acc_ref):
        k = pl.program_id(2)

        @pl.when(k == 0)
        def _():
            acc_ref[...] = jnp.zeros_like(acc_ref)

        a = a_ref[...].astype(jnp.bfloat16)          # no-op if already bf16
        if resident:
            start = pl.multiple_of(k * tk, 128)
            b = b_ref[pl.ds(start, tk), :].astype(jnp.bfloat16)
        else:
            b = b_ref[...].astype(jnp.bfloat16)

        acc_ref[...] += jnp.dot(a, b, preferred_element_type=jnp.float32)

        @pl.when(k == pl.num_programs(2) - 1)
        def _():
            res = acc_ref[...]
            if with_bias:
                res = res + bias_ref[...]            # f32 broadcast over rows
            o_ref[...] = res.astype(o_ref.dtype)

    if with_bias:
        return body

    def body_no_bias(a_ref, b_ref, o_ref, acc_ref):
        return body(a_ref, b_ref, None, o_ref, acc_ref)

    return body_no_bias


def _gcn_matmul(a, b, bias2d, *, tm, tn, tk, out_dtype):
    """C = A @ B (+ bias2d broadcast over rows). All dims pre-padded to tiles.

    Grid order is (j, i, k): the j-dependent RHS stripe stays VMEM-resident
    across all row tiles and contraction steps for a given j.
    """
    m, kdim = a.shape
    kdim_b, n = b.shape
    assert kdim == kdim_b
    nj, ni, nk = n // tn, m // tm, kdim // tk

    resident = (2 * kdim * tn * b.dtype.itemsize) <= _RESIDENT_RHS_BYTES

    if resident:
        b_spec = pl.BlockSpec((kdim, tn), lambda j, i, k: (0, j))
    else:
        b_spec = pl.BlockSpec((tk, tn), lambda j, i, k: (k, j))

    in_specs = [pl.BlockSpec((tm, tk), lambda j, i, k: (i, k)), b_spec]
    args = [a, b]
    if bias2d is not None:
        in_specs.append(pl.BlockSpec((1, tn), lambda j, i, k: (0, j)))
        args.append(bias2d)

    kernel = _make_kernel(resident=resident, tk=tk, with_bias=bias2d is not None)

    # VMEM budget: double-buffered A tile, B (stripe or tile), out tile, plus
    # the f32 accumulator and bias.  Set the scoped limit explicitly (v5e's
    # default is only 16 MiB) with headroom, capped below v7x's 64 MiB.
    out_item = np.dtype(out_dtype).itemsize
    b_rows = kdim if resident else tk
    vmem_est = (tm * tk * a.dtype.itemsize * 2
                + b_rows * tn * b.dtype.itemsize * 2
                + tm * tn * out_item * 2
                + tm * tn * 4
                + (tn * 4 * 2 if bias2d is not None else 0))
    vmem_limit = int(min(max(vmem_est * 3 // 2 + (4 << 20), 32 << 20), 56 << 20))

    return pl.pallas_call(
        kernel,
        out_shape=jax.ShapeDtypeStruct((m, n), out_dtype),
        grid_spec=pltpu.PrefetchScalarGridSpec(
            num_scalar_prefetch=0,
            grid=(nj, ni, nk),
            in_specs=in_specs,
            out_specs=pl.BlockSpec((tm, tn), lambda j, i, k: (i, j)),
            scratch_shapes=[pltpu.VMEM((tm, tn), jnp.float32)],
        ),
        compiler_params=pltpu.CompilerParams(
            dimension_semantics=("parallel", "parallel", "arbitrary"),
            vmem_limit_bytes=vmem_limit),
    )(*args)


# --------------------------------------------------------------------------
# GCN layer forward
# --------------------------------------------------------------------------
def gcn_layer(x, weight, adj, bias=None, *,
              tm_pref=512, tn_pref=512, tk_pref=1024):
    """GraphConvolutionLayer forward: adj @ (x @ weight) [+ bias].

    x:      [N, in_features]            float32
    weight: [in_features, out_features] float32
    adj:    [N, N] dense adjacency (dense stand-in for torch.spmm's sparse adj)
    bias:   [out_features] or None
    """
    # TODO(synk): torch.spmm consumes a sparse adjacency; a dense matmul is the
    # faithful dense equivalent here (a CSR gather kernel is out of scope).
    n, in_f = x.shape
    out_f = weight.shape[1]

    # Padded sizes + tiles (all multiples of 128; padding capped).
    n_p, tm = _pad_and_tile(n, tm_pref)
    tm = _split_for_megacore(n_p, tm)          # >= 2 row tiles for v7x megacore
    tk_n = _pick_tile(n_p, tk_pref)            # contraction over nodes (A @ S)
    out_f_p, tn = _pad_and_tile(out_f, tn_pref)
    in_f_p = _round_up(in_f, 128)
    tk_f = _pick_tile(in_f_p, tk_pref)         # contraction over in_features

    x_p = _prep(x, n_p, in_f_p)
    w_p = _prep(weight, in_f_p, out_f_p)
    adj_p = _prep(adj, n_p, n_p)               # stays f32 if already aligned

    # Stage 1: support = X @ W, emitted in bf16 (it is stage 2's RHS stripe).
    support = _gcn_matmul(x_p, w_p, None,
                          tm=tm, tn=tn, tk=tk_f, out_dtype=jnp.bfloat16)

    # Stage 2: out = A @ support (+ bias once, on the last contraction step).
    b2d = None
    if bias is not None:
        b2d = jnp.pad(bias.astype(jnp.float32).reshape(1, out_f),
                      ((0, 0), (0, out_f_p - out_f)))
    out_p = _gcn_matmul(adj_p, support, b2d,
                        tm=tm, tn=tn, tk=tk_n, out_dtype=jnp.float32)

    return out_p[:n, :out_f]


# --------------------------------------------------------------------------
# Self-test
# --------------------------------------------------------------------------
def _reference(x, weight, adj, bias):
    out = adj @ (x @ weight)
    if bias is not None:
        out = out + bias[None, :]
    return out


def _make_inputs(key, n, in_f, out_f):
    kx, ka, kw, kb = jax.random.split(key, 4)
    x = jax.random.normal(kx, (n, in_f), dtype=jnp.float32)
    a_raw = (jax.random.uniform(ka, (n, n)) > 0.5).astype(jnp.float32)
    adj = a_raw + a_raw.T + jnp.eye(n, dtype=jnp.float32)
    adj = adj / jnp.sum(adj, axis=1, keepdims=True)       # row-normalized
    weight = jax.random.normal(kw, (in_f, out_f), dtype=jnp.float32) * 0.1
    bias = jax.random.normal(kb, (out_f,), dtype=jnp.float32) * 0.1
    return x, adj, weight, bias


if __name__ == "__main__":
    key = jax.random.PRNGKey(0)
    k1, k2 = jax.random.split(key)

    # Case 1: module-consistent toy shapes (N=8 nodes, 16 -> 32 features),
    # with and without bias.  Everything pads up to one 128 tile.
    N, IN_F, OUT_F = 8, 16, 32
    x, adj, weight, bias = _make_inputs(k1, N, IN_F, OUT_F)
    out = jax.block_until_ready(gcn_layer(x, weight, adj, bias))
    out_nb = jax.block_until_ready(gcn_layer(x, weight, adj, None))
    ref = _reference(x, weight, adj, bias)
    ref_nb = _reference(x, weight, adj, None)
    assert out.shape == (N, OUT_F) and out_nb.shape == (N, OUT_F)
    assert float(jnp.max(jnp.abs(out - ref))) < 5e-2, "mismatch (bias)"
    assert float(jnp.max(jnp.abs(out_nb - ref_nb))) < 5e-2, "mismatch (no bias)"

    # Case 2: 128-aligned N with small tile prefs to exercise the multi-tile
    # grid, the f32 adjacency fed straight in (in-kernel cast), the resident
    # RHS stripe with dynamic k-slicing, and the multi-row-tile megacore path.
    N2, IN_F2, OUT_F2 = 256, 64, 64
    x2, adj2, weight2, bias2 = _make_inputs(k2, N2, IN_F2, OUT_F2)
    out2 = jax.block_until_ready(
        gcn_layer(x2, weight2, adj2, bias2, tm_pref=128, tk_pref=128))
    ref2 = _reference(x2, weight2, adj2, bias2)
    assert out2.shape == (N2, OUT_F2)
    assert float(jnp.max(jnp.abs(out2 - ref2))) < 5e-2, "mismatch (case 2)"

    print("KERNEL_OK")
</pallas_src>

<mosaic_0001>
module attributes {stable_mosaic.version = 11 : i64} {
  func.func @body_no_bias(%arg0: i32, %arg1: i32, %arg2: i32, %arg3: memref<128x128xbf16, #tpu.memory_space<vmem>>, %arg4: memref<128x128xbf16, #tpu.memory_space<vmem>>, %arg5: memref<128x128xbf16, #tpu.memory_space<vmem>>, %arg6: memref<128x128xf32, #tpu.memory_space<vmem>>) attributes {dimension_semantics = [#tpu.dimension_semantics<parallel>, #tpu.dimension_semantics<parallel>, #tpu.dimension_semantics<arbitrary>], iteration_bounds = array<i64: 1, 1, 1>, scalar_prefetch = 0 : i64, scratch_operands = 1 : i64, tpu.core_type = #tpu.core_type<tc>, window_params = [{transform_indices = @transform_0, window_bounds = array<i64: 128, 128>}, {transform_indices = @transform_1, window_bounds = array<i64: 128, 128>}, {transform_indices = @transform_2, window_bounds = array<i64: 128, 128>}]} {
    %c0_i32 = arith.constant 0 : i32
    %0 = arith.cmpi eq, %arg2, %c0_i32 : i32
    %1 = arith.extui %0 : i1 to i32
    %c0_i32_0 = arith.constant 0 : i32
    %2 = arith.cmpi ne, %1, %c0_i32_0 : i32
    scf.if %2 {
      %cst_9 = arith.constant 0.000000e+00 : f32
      %15 = vector.broadcast %cst_9 : f32 to vector<128x128xf32>
      %c0_10 = arith.constant 0 : index
      %c0_11 = arith.constant 0 : index
      %16 = vector.load %arg6[%c0_10, %c0_11] : memref<128x128xf32, #tpu.memory_space<vmem>>, vector<128x128xf32>
      tpu.vector_store %arg6[%c0_10, %c0_11], %15 {strides = array<i32>} : memref<128x128xf32, #tpu.memory_space<vmem>>, vector<128x128xf32>,
    } else {
    }
    %c0 = arith.constant 0 : index
    %c0_1 = arith.constant 0 : index
    %3 = vector.load %arg3[%c0, %c0_1] : memref<128x128xbf16, #tpu.memory_space<vmem>>, vector<128x128xbf16>
    %c128_i32 = arith.constant 128 : i32
    %4 = arith.muli %arg2, %c128_i32 : i32
    %5 = tpu.assume_multiple %4, 128 : i32
    %6 = arith.index_cast %5 : i32 to index
    %c0_2 = arith.constant 0 : index
    %7 = vector.load %arg4[%6, %c0_2] : memref<128x128xbf16, #tpu.memory_space<vmem>>, vector<128x128xbf16>
    %c0_3 = arith.constant 0 : index
    %c0_4 = arith.constant 0 : index
    %8 = vector.load %arg6[%c0_3, %c0_4] : memref<128x128xf32, #tpu.memory_space<vmem>>, vector<128x128xf32>
    %cst = arith.constant dense<0.000000e+00> : vector<128x128xf32>
    %9 = tpu.matmul %3, %7, %cst {dimension_numbers = #tpu.dot_dimension_numbers<[1], [0], [0], [1], [0, 0, 1, 1], [], []>} : vector<128x128xbf16>, vector<128x128xbf16>, vector<128x128xf32> -> vector<128x128xf32>
    %10 = arith.addf %8, %9 : vector<128x128xf32>
    %c0_5 = arith.constant 0 : index
    %c0_6 = arith.constant 0 : index
    %11 = vector.load %arg6[%c0_5, %c0_6] : memref<128x128xf32, #tpu.memory_space<vmem>>, vector<128x128xf32>
    tpu.vector_store %arg6[%c0_5, %c0_6], %10 {strides = array<i32>} : memref<128x128xf32, #tpu.memory_space<vmem>>, vector<128x128xf32>,
    %c0_i32_7 = arith.constant 0 : i32
    %12 = arith.cmpi eq, %arg2, %c0_i32_7 : i32
    %13 = arith.extui %12 : i1 to i32
    %c0_i32_8 = arith.constant 0 : i32
    %14 = arith.cmpi ne, %13, %c0_i32_8 : i32
    scf.if %14 {
      %c0_9 = arith.constant 0 : index
      %c0_10 = arith.constant 0 : index
      %15 = vector.load %arg6[%c0_9, %c0_10] : memref<128x128xf32, #tpu.memory_space<vmem>>, vector<128x128xf32>
      %16 = arith.truncf %15 : vector<128x128xf32> to vector<128x128xbf16>
      %c0_11 = arith.constant 0 : index
      %c0_12 = arith.constant 0 : index
      %17 = vector.load %arg5[%c0_11, %c0_12] : memref<128x128xbf16, #tpu.memory_space<vmem>>, vector<128x128xbf16>
      tpu.vector_store %arg5[%c0_11, %c0_12], %16 {strides = array<i32>} : memref<128x128xbf16, #tpu.memory_space<vmem>>, vector<128x128xbf16>,
    } else {
    }
    return
  }
  func.func @transform_0(%arg0: i32, %arg1: i32, %arg2: i32) -> (i32, i32) {
    %c0_i32 = arith.constant 0 : i32
    return %arg1, %arg2 : i32, i32
  }
  func.func @transform_1(%arg0: i32, %arg1: i32, %arg2: i32) -> (i32, i32) {
    %c0_i32 = arith.constant 0 : i32
    %c0_i32_0 = arith.constant 0 : i32
    return %c0_i32, %arg0 : i32, i32
  }
  func.func @transform_2(%arg0: i32, %arg1: i32, %arg2: i32) -> (i32, i32) {
    %c0_i32 = arith.constant 0 : i32
    return %arg1, %arg0 : i32, i32
  }
}

</mosaic_0001>

<llo_original>
// kernel: tpu_custom_call.1
$region0: #{tpu_custom_call.1}
  #allocation0 [shape = 'u32[]', space=smem, size = 0x4, offset = 0x4, fixed_abs, tag = 'smem constant byte address 0x4 - core index']
  #allocation1 [shape = 'u32[144,128]{1,0:T(1,128)}', space=vmem, size = 0x12000, scoped, tag = 'internal scratch']
  #allocation2 [shape = 'f32[128,128]{1,0:T(8,128)}', space=vmem, size = 0x10000, scoped, tag = 'scratch operand']
  %s0 = inlined_call_operand.hbm [shape: bf16[128,128], index: 0, kind: input, shape index: {}]
  %s1 = inlined_call_operand.hbm [shape: bf16[128,128], index: 1, kind: input, shape index: {}]
  %s2 = inlined_call_operand.hbm [shape: bf16[128,128], index: 2, kind: output, shape index: {}]
  %s3 = sld [smem:[#allocation0]]
  $region34: #{tpu_custom_call.1} parent=0
    _
  %s5 = ssub.s32 1, %s3
  %s6 = scalar_select 0, %s5, %s3
  $region1: #{tpu_custom_call.1} parent=0
    #allocation3 [shape = 'u8[32768]{0}', space=vmem, size = 0x8000, scoped, tag = 'input window, operand 0, single buffered']
    #allocation4 [shape = 's32[1]{0}', space=sflag, size = 0x4, scoped, tag = 'scoped memory for tpu_custom_call.1']
    #allocation5 [shape = 's32[1]{0}', space=sflag, size = 0x4, scoped, tag = 'scoped memory for tpu_custom_call.1']
    #allocation6 [shape = 'u8[32768]{0}', space=vmem, size = 0x8000, scoped, tag = 'input window, operand 1, single buffered']
    #allocation7 [shape = 's32[1]{0}', space=sflag, size = 0x4, scoped, tag = 'scoped memory for tpu_custom_call.1']
    #allocation8 [shape = 'u8[32768]{0}', space=vmem, size = 0x8000, scoped, tag = 'output window, operand 0, single buffered']
    %7 = vsyncpa [#allocation4], 0
    %8 = vsyncpa [#allocation7], 0
    %9 = vsyncpa [#allocation5], 0
    // Predicated region
    $region2: #{tpu_custom_call.1} parent=1 // pred_check
      _
    $region3: #{tpu_custom_call.1} parent=1 // pred_check_branch
      %11 = sbr.rel (0) target = $region5
    $region4: #{tpu_custom_call.1} parent=1 // pred_region
      %s13 = ssub.s32 1024, 1024
      %14 = vsyncadd [#allocation4], %s13
      %s15 = sshll.u32 [#allocation3], 4
      %s16 = int_to_ptr.vmem [resolvable:$true] %s15
      %21 = dma.hbm_to_vmem [thread:$0]  %s0, 1024, %s16, [#allocation4], 64, 64, 4
    $region5: #{tpu_custom_call.1} parent=1 // pred_fallthru
      _
    // Predicated region
    $region6: #{tpu_custom_call.1} parent=1 // pred_check
      _
    $region7: #{tpu_custom_call.1} parent=1 // pred_check_branch
      %23 = sbr.rel (0) target = $region9
    $region8: #{tpu_custom_call.1} parent=1 // pred_region
      %s25 = ssub.s32 1024, 1024
      %26 = vsyncadd [#allocation7], %s25
      %s27 = sshll.u32 [#allocation6], 4
      %s28 = int_to_ptr.vmem [resolvable:$true] %s27
      %33 = dma.hbm_to_vmem [thread:$0]  %s1, 1024, %s28, [#allocation7], 64, 64, 4
    $region9: #{tpu_custom_call.1} parent=1 // pred_fallthru
      _
    // Predicated region
    $region10: #{tpu_custom_call.1} parent=1 // pred_check
      _
    $region11: #{tpu_custom_call.1} parent=1 // pred_check_branch
      %35 = sbr.rel (0) target = $region13
    $region12: #{tpu_custom_call.1} parent=1 // pred_region
      %36 = dma.done [#allocation4], 1024
    $region13: #{tpu_custom_call.1} parent=1 // pred_fallthru
      _
    // Predicated region
    $region14: #{tpu_custom_call.1} parent=1 // pred_check
      _
    $region15: #{tpu_custom_call.1} parent=1 // pred_check_branch
      %38 = sbr.rel (0) target = $region17
    $region16: #{tpu_custom_call.1} parent=1 // pred_region
      %39 = dma.done [#allocation7], 1024
    $region17: #{tpu_custom_call.1} parent=1 // pred_fallthru
      _
    %p41 = scmp.eq.s32.totalorder 0, 0
    // Predicated region
    $region18: #{tpu_custom_call.1} parent=1 // pred_check
      %p42 = pneg %p41
    $region19: #{tpu_custom_call.1} parent=1 // pred_check_branch
      %44 = sbr.rel (%p42) target = $region21
    $region20: #{tpu_custom_call.1} parent=1 // pred_region
      %45 = vst [vmem:[#allocation2] sm:$0xff] 0.0
      %46 = vst [vmem:[#allocation2 + $0x8] sm:$0xff] 0.0
      %47 = vst [vmem:[#allocation2 + $0x10] sm:$0xff] 0.0
      %48 = vst [vmem:[#allocation2 + $0x18] sm:$0xff] 0.0
      %49 = vst [vmem:[#allocation2 + $0x20] sm:$0xff] 0.0
      %50 = vst [vmem:[#allocation2 + $0x28] sm:$0xff] 0.0
      %51 = vst [vmem:[#allocation2 + $0x30] sm:$0xff] 0.0
      %52 = vst [vmem:[#allocation2 + $0x38] sm:$0xff] 0.0
      %53 = vst [vmem:[#allocation2 + $0x40] sm:$0xff] 0.0
      %54 = vst [vmem:[#allocation2 + $0x48] sm:$0xff] 0.0
      %55 = vst [vmem:[#allocation2 + $0x50] sm:$0xff] 0.0
      %56 = vst [vmem:[#allocation2 + $0x58] sm:$0xff] 0.0
      %57 = vst [vmem:[#allocation2 + $0x60] sm:$0xff] 0.0
      %58 = vst [vmem:[#allocation2 + $0x68] sm:$0xff] 0.0
      %59 = vst [vmem:[#allocation2 + $0x70] sm:$0xff] 0.0
      %60 = vst [vmem:[#allocation2 + $0x78] sm:$0xff] 0.0
    $region21: #{tpu_custom_call.1} parent=1 // pred_fallthru
      _
    %v61 = vld [vmem:[#allocation3] sm:$0xf]
    %v62 = vld [vmem:[#allocation3 + $0x4] sm:$0xf]
    %v63 = vld [vmem:[#allocation3 + $0x8] sm:$0xf]
    %v64 = vld [vmem:[#allocation3 + $0xc] sm:$0xf]
    %v65 = vld [vmem:[#allocation3 + $0x10] sm:$0xf]
    %v66 = vld [vmem:[#allocation3 + $0x14] sm:$0xf]
    %v67 = vld [vmem:[#allocation3 + $0x18] sm:$0xf]
    %v68 = vld [vmem:[#allocation3 + $0x1c] sm:$0xf]
    %v69 = vld [vmem:[#allocation3 + $0x20] sm:$0xf]
    %v70 = vld [vmem:[#allocation3 + $0x24] sm:$0xf]
    %v71 = vld [vmem:[#allocation3 + $0x28] sm:$0xf]
    %v72 = vld [vmem:[#allocation3 + $0x2c] sm:$0xf]
    %v73 = vld [vmem:[#allocation3 + $0x30] sm:$0xf]
    %v74 = vld [vmem:[#allocation3 + $0x34] sm:$0xf]
    %v75 = vld [vmem:[#allocation3 + $0x38] sm:$0xf]
    %v76 = vld [vmem:[#allocation3 + $0x3c] sm:$0xf]
    %s77 = smul.u32 0, 128
    %s78 = sshra.s32 %s77, 3
    %s79 = sand.u32 %s77, 7
    %s80 = smul.addr %s78, 4
    %s81 = scalar_lea.vmem [#allocation6], %s80
    %v82 = vld [vmem:[%s81] sm:$0xf]
    %v83 = vld [vmem:[%s81 + $0x4] sm:$0xf]
    %v84 = vld [vmem:[%s81 + $0x8] sm:$0xf]
    %v85 = vld [vmem:[%s81 + $0xc] sm:$0xf]
    %v86 = vld [vmem:[%s81 + $0x10] sm:$0xf]
    %v87 = vld [vmem:[%s81 + $0x14] sm:$0xf]
    %v88 = vld [vmem:[%s81 + $0x18] sm:$0xf]
    %v89 = vld [vmem:[%s81 + $0x1c] sm:$0xf]
    %v90 = vld [vmem:[%s81 + $0x20] sm:$0xf]
    %v91 = vld [vmem:[%s81 + $0x24] sm:$0xf]
    %v92 = vld [vmem:[%s81 + $0x28] sm:$0xf]
    %v93 = vld [vmem:[%s81 + $0x2c] sm:$0xf]
    %v94 = vld [vmem:[%s81 + $0x30] sm:$0xf]
    %v95 = vld [vmem:[%s81 + $0x34] sm:$0xf]
    %v96 = vld [vmem:[%s81 + $0x38] sm:$0xf]
    %v97 = vld [vmem:[%s81 + $0x3c] sm:$0xf]
    %v98 = vld [vmem:[#allocation2] sm:$0xff]
    %v99 = vld [vmem:[#allocation2 + $0x8] sm:$0xff]
    %v100 = vld [vmem:[#allocation2 + $0x10] sm:$0xff]
    %v101 = vld [vmem:[#allocation2 + $0x18] sm:$0xff]
    %v102 = vld [vmem:[#allocation2 + $0x20] sm:$0xff]
    %v103 = vld [vmem:[#allocation2 + $0x28] sm:$0xff]
    %v104 = vld [vmem:[#allocation2 + $0x30] sm:$0xff]
    %v105 = vld [vmem:[#allocation2 + $0x38] sm:$0xff]
    %v106 = vld [vmem:[#allocation2 + $0x40] sm:$0xff]
    %v107 = vld [vmem:[#allocation2 + $0x48] sm:$0xff]
    %v108 = vld [vmem:[#allocation2 + $0x50] sm:$0xff]
    %v109 = vld [vmem:[#allocation2 + $0x58] sm:$0xff]
    %v110 = vld [vmem:[#allocation2 + $0x60] sm:$0xff]
    %v111 = vld [vmem:[#allocation2 + $0x68] sm:$0xff]
    %v112 = vld [vmem:[#allocation2 + $0x70] sm:$0xff]
    %v113 = vld [vmem:[#allocation2 + $0x78] sm:$0xff]
    %v130 = vunpack.c.l.b16 %v61
    %v131 = vunpack.c.l.b16 %v62
    %v132 = vunpack.c.l.b16 %v63
    %v133 = vunpack.c.l.b16 %v64
    %v134 = vunpack.c.l.b16 %v65
    %v135 = vunpack.c.l.b16 %v66
    %v136 = vunpack.c.l.b16 %v67
    %v137 = vunpack.c.l.b16 %v68
    %v138 = vunpack.c.l.b16 %v69
    %v139 = vunpack.c.l.b16 %v70
    %v140 = vunpack.c.l.b16 %v71
    %v141 = vunpack.c.l.b16 %v72
    %v142 = vunpack.c.l.b16 %v73
    %v143 = vunpack.c.l.b16 %v74
    %v144 = vunpack.c.l.b16 %v75
    %v145 = vunpack.c.l.b16 %v76
    %v146 = vpack.c.b16 %v131, %v130
    %v147 = vpack.c.b16 %v133, %v132
    %v148 = vpack.c.b16 %v135, %v134
    %v149 = vpack.c.b16 %v137, %v136
    %v150 = vpack.c.b16 %v139, %v138
    %v151 = vpack.c.b16 %v141, %v140
    %v152 = vpack.c.b16 %v143, %v142
    %v153 = vpack.c.b16 %v145, %v144
    %v178 = vunpack.c.l.b16 %v82
    %v179 = vunpack.c.l.b16 %v83
    %v180 = vunpack.c.l.b16 %v84
    %v181 = vunpack.c.l.b16 %v85
    %v182 = vunpack.c.l.b16 %v86
    %v183 = vunpack.c.l.b16 %v87
    %v184 = vunpack.c.l.b16 %v88
    %v185 = vunpack.c.l.b16 %v89
    %v186 = vunpack.c.l.b16 %v90
    %v187 = vunpack.c.l.b16 %v91
    %v188 = vunpack.c.l.b16 %v92
    %v189 = vunpack.c.l.b16 %v93
    %v190 = vunpack.c.l.b16 %v94
    %v191 = vunpack.c.l.b16 %v95
    %v192 = vunpack.c.l.b16 %v96
    %v193 = vunpack.c.l.b16 %v97
    %v194 = vpack.c.b16 %v179, %v178
    %v195 = vpack.c.b16 %v181, %v180
    %v196 = vpack.c.b16 %v183, %v182
    %v197 = vpack.c.b16 %v185, %v184
    %v198 = vpack.c.b16 %v187, %v186
    %v199 = vpack.c.b16 %v189, %v188
    %v200 = vpack.c.b16 %v191, %v190
    %v201 = vpack.c.b16 %v193, %v192
    %210 = vmatprep.subr.bf16.mxu0 0
    %211 = vmatpush1.bf16.msra.mxu0 %v194
    %212 = vmatprep.subr.bf16.mxu0 0
    %213 = vmatpush1.bf16.msra.mxu0 %v195
    %214 = vmatprep.subr.bf16.mxu0 0
    %215 = vmatpush1.bf16.msra.mxu0 %v196
    %216 = vmatprep.subr.bf16.mxu0 0
    %217 = vmatpush1.bf16.msra.mxu0 %v197
    %218 = vmatprep.subr.bf16.mxu0 0
    %219 = vmatpush1.bf16.msra.mxu0 %v198
    %220 = vmatprep.subr.bf16.mxu0 0
    %221 = vmatpush1.bf16.msra.mxu0 %v199
    %222 = vmatprep.subr.bf16.mxu0 0
    %223 = vmatpush1.bf16.msra.mxu0 %v200
    %224 = vmatprep.subr.bf16.mxu0 0
    %225 = vmatpush1.bf16.msra.mxu0 %v201
    %226 = vmatprep.subr.bf16.mxu0 0
    %227 = vmatpush1.bf16.msra.mxu0 0
    %228 = vmatprep.subr.bf16.mxu0 0
    %229 = vmatpush1.bf16.msra.mxu0 0
    %230 = vmatprep.subr.bf16.mxu0 0
    %231 = vmatpush1.bf16.msra.mxu0 0
    %232 = vmatprep.subr.bf16.mxu0 0
    %233 = vmatpush1.bf16.msra.mxu0 0
    %234 = vmatprep.subr.bf16.mxu0 0
    %235 = vmatpush1.bf16.msra.mxu0 0
    %236 = vmatprep.subr.bf16.mxu0 0
    %237 = vmatpush1.bf16.msra.mxu0 0
    %238 = vmatprep.subr.bf16.mxu0 0
    %239 = vmatpush1.bf16.msra.mxu0 0
    %240 = vmatprep.subr.bf16.mxu0 0
    %241 = vmatpush1.bf16.msra.mxu0 0
    %242 = vmatprep.mubr.bf16.mxu0 0
    %243 = vmatmul.mubr.bf16.gmra.mrb[0].mxu0 %v146
    %v244 = vpop.f32.mrb[0].mxu0
    %v245 = vadd.f32 0.0, %v244
    %v246 = vpop.f32.mrb[0].mxu0
    %v247 = vpop.f32.mrb[0].mxu0
    %v248 = vadd.f32 0.0, %v247
    %v249 = vpop.f32.mrb[0].mxu0
    %250 = vmatprep.mubr.bf16.mxu0 0
    %251 = vmatmul.mubr.bf16.gmra.mrb[0].mxu0 %v147
    %v252 = vpop.f32.mrb[0].mxu0
    %v253 = vadd.f32 0.0, %v252
    %v254 = vpop.f32.mrb[0].mxu0
    %v255 = vpop.f32.mrb[0].mxu0
    %v256 = vadd.f32 0.0, %v255
    %v257 = vpop.f32.mrb[0].mxu0
    %258 = vmatprep.mubr.bf16.mxu0 0
    %259 = vmatmul.mubr.bf16.gmra.mrb[0].mxu0 %v148
    %v260 = vpop.f32.mrb[0].mxu0
    %v261 = vadd.f32 0.0, %v260
    %v262 = vpop.f32.mrb[0].mxu0
    %v263 = vpop.f32.mrb[0].mxu0
    %v264 = vadd.f32 0.0, %v263
    %v265 = vpop.f32.mrb[0].mxu0
    %266 = vmatprep.mubr.bf16.mxu0 0
    %267 = vmatmul.mubr.bf16.gmra.mrb[0].mxu0 %v149
    %v268 = vpop.f32.mrb[0].mxu0
    %v269 = vadd.f32 0.0, %v268
    %v270 = vpop.f32.mrb[0].mxu0
    %v271 = vpop.f32.mrb[0].mxu0
    %v272 = vadd.f32 0.0, %v271
    %v273 = vpop.f32.mrb[0].mxu0
    %274 = vmatprep.mubr.bf16.mxu0 0
    %275 = vmatmul.mubr.bf16.gmra.mrb[0].mxu0 %v150
    %v276 = vpop.f32.mrb[0].mxu0
    %v277 = vadd.f32 0.0, %v276
    %v278 = vpop.f32.mrb[0].mxu0
    %v279 = vpop.f32.mrb[0].mxu0
    %v280 = vadd.f32 0.0, %v279
    %v281 = vpop.f32.mrb[0].mxu0
    %282 = vmatprep.mubr.bf16.mxu0 0
    %283 = vmatmul.mubr.bf16.gmra.mrb[0].mxu0 %v151
    %v284 = vpop.f32.mrb[0].mxu0
    %v285 = vadd.f32 0.0, %v284
    %v286 = vpop.f32.mrb[0].mxu0
    %v287 = vpop.f32.mrb[0].mxu0
    %v288 = vadd.f32 0.0, %v287
    %v289 = vpop.f32.mrb[0].mxu0
    %290 = vmatprep.mubr.bf16.mxu0 0
    %291 = vmatmul.mubr.bf16.gmra.mrb[0].mxu0 %v152
    %v292 = vpop.f32.mrb[0].mxu0
    %v293 = vadd.f32 0.0, %v292
    %v294 = vpop.f32.mrb[0].mxu0
    %v295 = vpop.f32.mrb[0].mxu0
    %v296 = vadd.f32 0.0, %v295
    %v297 = vpop.f32.mrb[0].mxu0
    %298 = vmatprep.mubr.bf16.mxu0 0
    %299 = vmatmul.mubr.bf16.gmra.mrb[0].mxu0 %v153
    %v300 = vpop.f32.mrb[0].mxu0
    %v301 = vadd.f32 0.0, %v300
    %v302 = vpop.f32.mrb[0].mxu0
    %v303 = vpop.f32.mrb[0].mxu0
    %v304 = vadd.f32 0.0, %v303
    %v305 = vpop.f32.mrb[0].mxu0
    %306 = vdwg.mxu0
    %v307 = vadd.f32 %v98, %v245
    %v308 = vadd.f32 %v99, %v248
    %v309 = vadd.f32 %v100, %v253
    %v310 = vadd.f32 %v101, %v256
    %v311 = vadd.f32 %v102, %v261
    %v312 = vadd.f32 %v103, %v264
    %v313 = vadd.f32 %v104, %v269
    %v314 = vadd.f32 %v105, %v272
    %v315 = vadd.f32 %v106, %v277
    %v316 = vadd.f32 %v107, %v280
    %v317 = vadd.f32 %v108, %v285
    %v318 = vadd.f32 %v109, %v288
    %v319 = vadd.f32 %v110, %v293
    %v320 = vadd.f32 %v111, %v296
    %v321 = vadd.f32 %v112, %v301
    %v322 = vadd.f32 %v113, %v304
    %323 = vst [vmem:[#allocation2] sm:$0xff] %v307
    %324 = vst [vmem:[#allocation2 + $0x8] sm:$0xff] %v308
    %325 = vst [vmem:[#allocation2 + $0x10] sm:$0xff] %v309
    %326 = vst [vmem:[#allocation2 + $0x18] sm:$0xff] %v310
    %327 = vst [vmem:[#allocation2 + $0x20] sm:$0xff] %v311
    %328 = vst [vmem:[#allocation2 + $0x28] sm:$0xff] %v312
    %329 = vst [vmem:[#allocation2 + $0x30] sm:$0xff] %v313
    %330 = vst [vmem:[#allocation2 + $0x38] sm:$0xff] %v314
    %331 = vst [vmem:[#allocation2 + $0x40] sm:$0xff] %v315
    %332 = vst [vmem:[#allocation2 + $0x48] sm:$0xff] %v316
    %333 = vst [vmem:[#allocation2 + $0x50] sm:$0xff] %v317
    %334 = vst [vmem:[#allocation2 + $0x58] sm:$0xff] %v318
    %335 = vst [vmem:[#allocation2 + $0x60] sm:$0xff] %v319
    %336 = vst [vmem:[#allocation2 + $0x68] sm:$0xff] %v320
    %337 = vst [vmem:[#allocation2 + $0x70] sm:$0xff] %v321
    %338 = vst [vmem:[#allocation2 + $0x78] sm:$0xff] %v322
    // Predicated region
    $region22: #{tpu_custom_call.1} parent=1 // pred_check
      %p339 = pneg %p41
    $region23: #{tpu_custom_call.1} parent=1 // pred_check_branch
      %341 = sbr.rel (%p339) target = $region25
    $region24: #{tpu_custom_call.1} parent=1 // pred_region
      %v342 = vld [vmem:[#allocation2] sm:$0xff]
      %v343 = vld [vmem:[#allocation2 + $0x8] sm:$0xff]
      %v344 = vld [vmem:[#allocation2 + $0x10] sm:$0xff]
      %v345 = vld [vmem:[#allocation2 + $0x18] sm:$0xff]
      %v346 = vld [vmem:[#allocation2 + $0x20] sm:$0xff]
      %v347 = vld [vmem:[#allocation2 + $0x28] sm:$0xff]
      %v348 = vld [vmem:[#allocation2 + $0x30] sm:$0xff]
      %v349 = vld [vmem:[#allocation2 + $0x38] sm:$0xff]
      %v350 = vld [vmem:[#allocation2 + $0x40] sm:$0xff]
      %v351 = vld [vmem:[#allocation2 + $0x48] sm:$0xff]
      %v352 = vld [vmem:[#allocation2 + $0x50] sm:$0xff]
      %v353 = vld [vmem:[#allocation2 + $0x58] sm:$0xff]
      %v354 = vld [vmem:[#allocation2 + $0x60] sm:$0xff]
      %v355 = vld [vmem:[#allocation2 + $0x68] sm:$0xff]
      %v356 = vld [vmem:[#allocation2 + $0x70] sm:$0xff]
      %v357 = vld [vmem:[#allocation2 + $0x78] sm:$0xff]
      %v358 = vpack.c.bf16 %v343, %v342
      %v359 = vpack.c.bf16 %v345, %v344
      %v360 = vpack.c.bf16 %v347, %v346
      %v361 = vpack.c.bf16 %v349, %v348
      %v362 = vpack.c.bf16 %v351, %v350
      %v363 = vpack.c.bf16 %v353, %v352
      %v364 = vpack.c.bf16 %v355, %v354
      %v365 = vpack.c.bf16 %v357, %v356
      %v374 = vunpack.c.l.b16 %v358
      %v375 = vunpack.c.h.b16 %v358
      %v376 = vunpack.c.l.b16 %v359
      %v377 = vunpack.c.h.b16 %v359
      %v378 = vunpack.c.l.b16 %v360
      %v379 = vunpack.c.h.b16 %v360
      %v380 = vunpack.c.l.b16 %v361
      %v381 = vunpack.c.h.b16 %v361
      %v382 = vunpack.c.l.b16 %v362
      %v383 = vunpack.c.h.b16 %v362
      %v384 = vunpack.c.l.b16 %v363
      %v385 = vunpack.c.h.b16 %v363
      %v386 = vunpack.c.l.b16 %v364
      %v387 = vunpack.c.h.b16 %v364
      %v388 = vunpack.c.l.b16 %v365
      %v389 = vunpack.c.h.b16 %v365
      %v390 = vpack.c.b16 %v374, %v374
      %v391 = vpack.c.b16 %v375, %v375
      %v392 = vpack.c.b16 %v376, %v376
      %v393 = vpack.c.b16 %v377, %v377
      %v394 = vpack.c.b16 %v378, %v378
      %v395 = vpack.c.b16 %v379, %v379
      %v396 = vpack.c.b16 %v380, %v380
      %v397 = vpack.c.b16 %v381, %v381
      %v398 = vpack.c.b16 %v382, %v382
      %v399 = vpack.c.b16 %v383, %v383
      %v400 = vpack.c.b16 %v384, %v384
      %v401 = vpack.c.b16 %v385, %v385
      %v402 = vpack.c.b16 %v386, %v386
      %v403 = vpack.c.b16 %v387, %v387
      %v404 = vpack.c.b16 %v388, %v388
      %v405 = vpack.c.b16 %v389, %v389
      %422 = vst [vmem:[#allocation8] sm:$0xf] %v390
      %423 = vst [vmem:[#allocation8 + $0x4] sm:$0xf] %v391
      %424 = vst [vmem:[#allocation8 + $0x8] sm:$0xf] %v392
      %425 = vst [vmem:[#allocation8 + $0xc] sm:$0xf] %v393
      %426 = vst [vmem:[#allocation8 + $0x10] sm:$0xf] %v394
      %427 = vst [vmem:[#allocation8 + $0x14] sm:$0xf] %v395
      %428 = vst [vmem:[#allocation8 + $0x18] sm:$0xf] %v396
      %429 = vst [vmem:[#allocation8 + $0x1c] sm:$0xf] %v397
      %430 = vst [vmem:[#allocation8 + $0x20] sm:$0xf] %v398
      %431 = vst [vmem:[#allocation8 + $0x24] sm:$0xf] %v399
      %432 = vst [vmem:[#allocation8 + $0x28] sm:$0xf] %v400
      %433 = vst [vmem:[#allocation8 + $0x2c] sm:$0xf] %v401
      %434 = vst [vmem:[#allocation8 + $0x30] sm:$0xf] %v402
      %435 = vst [vmem:[#allocation8 + $0x34] sm:$0xf] %v403
      %436 = vst [vmem:[#allocation8 + $0x38] sm:$0xf] %v404
      %437 = vst [vmem:[#allocation8 + $0x3c] sm:$0xf] %v405
    $region25: #{tpu_custom_call.1} parent=1 // pred_fallthru
      _
    // Predicated region
    $region26: #{tpu_custom_call.1} parent=1 // pred_check
      _
    $region27: #{tpu_custom_call.1} parent=1 // pred_check_branch
      %439 = sbr.rel (0) target = $region29
    $region28: #{tpu_custom_call.1} parent=1 // pred_region
      %s441 = ssub.s32 1024, 1024
      %442 = vsyncadd [#allocation5], %s441
      %s443 = sshll.u32 [#allocation8], 4
      %s444 = int_to_ptr.vmem [resolvable:$true] %s443
      %449 = dma.vmem_to_hbm [thread:$0]  %s444, 1024, %s2, [#allocation5], 64, 64, 4
    $region29: #{tpu_custom_call.1} parent=1 // pred_fallthru
      _
    // Predicated region
    $region30: #{tpu_custom_call.1} parent=1 // pred_check
      _
    $region31: #{tpu_custom_call.1} parent=1 // pred_check_branch
      %451 = sbr.rel (0) target = $region33
    $region32: #{tpu_custom_call.1} parent=1 // pred_region
      %452 = dma.done [#allocation5], 1024
    $region33: #{tpu_custom_call.1} parent=1 // pred_fallthru
      _
    %453 = vsyncpa [#allocation4], 1
    %454 = vsyncpa [#allocation7], 1
    %455 = vsyncpa [#allocation5], 1

</llo_original>
